<compile_context>
chip_gen: v5e
topology: v5e:2x2
jax: 0.10.0
libtpu: 0.0.40
codegen_flags: <defaults>
</compile_context>

<pallas_src>
import math
import numpy as np
import jax
import jax.numpy as jnp
from jax.experimental import pallas as pl
from jax.experimental.pallas import tpu as pltpu

# ---------------- module configuration (GraphTransformer __init__) ----------------
IN_SIZE    = 16                      # in_size  (!= hid_size -> exercises residual_w)
HID_SIZE   = 32                      # hid_size = head_size * num_heads
NUM_HEADS  = 2
HEAD_SIZE  = HID_SIZE // NUM_HEADS   # 16
NUM_NTYPES = 3
NUM_ETYPES = 4
SQRT_D     = math.sqrt(HEAD_SIZE)
LN_EPS     = 1e-5


# ------------------------------- fused forward kernel ------------------------------
def _make_fused_kernel(NE, HID):
    def kernel(x_ref, ntoh_ref, ntx_ref, nth_ref, etoh_ref,
               ssrc_ref, sdst_ref, sdstT_ref,
               tin_ref, thid_ref, wkqv_ref, wrel_ref, prit_ref,
               hsum_ref, hexp_ref, wa_ref, skip_ref, rw_ref, g_ref, b_ref,
               o_ref):
        f32, bf16 = jnp.float32, jnp.bfloat16
        xv    = x_ref[...]        # (N, IN)     bf16
        nt_oh = ntoh_ref[...]     # (N, T)      bf16  node-type one-hot
        ntx   = ntx_ref[...]      # (N, T*IN)   bf16  kron-expanded node-type one-hot
        nth   = nth_ref[...]      # (N, T*HID)  bf16
        et_oh = etoh_ref[...]     # (E, NE)     bf16  edge-type one-hot
        ssrc_ = ssrc_ref[...]     # (E, N)      bf16  src incidence
        sdst_ = sdst_ref[...]     # (E, N)      bf16  dst incidence
        sdstT = sdstT_ref[...]    # (N, E)      bf16  dst incidence, pre-transposed
        hexp  = hexp_ref[...]     # (H, HID)    bf16  per-head expand selector

        # ---- typed K|V|Q linear: node-type select folded into the matmul INPUT ----
        x_rep   = jnp.dot(xv, tin_ref[...], preferred_element_type=f32)     # replicate (N,T*IN)
        x_typed = ntx * x_rep.astype(bf16)                                   # exact 0/1 mask
        kvq = jnp.dot(x_typed, wkqv_ref[...], preferred_element_type=f32)    # (N, 3*HID)
        kvq_b = kvq.astype(bf16)                                             # cols: [k | v | q]

        # ---- gather node rows onto edges (one matmul per side, head-independent) ----
        kv_src = jnp.dot(ssrc_, kvq_b[:, :2 * HID], preferred_element_type=f32)  # (E, 2*HID)
        q_dst  = jnp.dot(sdst_, kvq_b[:, 2 * HID:], preferred_element_type=f32)  # (E, HID)

        # ---- all heads x all edge types relation_att / relation_msg: ONE matmul ----
        kwvm = jnp.dot(kv_src.astype(bf16), wrel_ref[...],
                       preferred_element_type=f32)                               # (E, 2*NE*HID)
        kw = et_oh[:, 0:1] * kwvm[:, :HID]
        vm = et_oh[:, 0:1] * kwvm[:, NE * HID:NE * HID + HID]
        for r in range(1, NE):                                                   # static, tiny
            sel = et_oh[:, r:r + 1]
            kw = kw + sel * kwvm[:, r * HID:(r + 1) * HID]
            vm = vm + sel * kwvm[:, NE * HID + r * HID:NE * HID + (r + 1) * HID]

        # ---- per-head attention logits ----
        prie = jnp.dot(et_oh, prit_ref[...], preferred_element_type=f32)         # (E, H)
        a = jnp.dot((kw * q_dst).astype(bf16), hsum_ref[...],
                    preferred_element_type=f32) * prie * (1.0 / SQRT_D)          # (E, H)

        # ---- edge softmax grouped by destination, normalized AFTER aggregation ----
        # softmax is shift-invariant per destination group, so a single global
        # per-head max is a valid shift; the ssum<=0 guard keeps isolated (or
        # fully-underflowed) destinations at agg = 0, matching segment_sum.
        # TODO(synk): restore a true per-destination max if logit spread can exceed ~80.
        gmax = jnp.max(a, axis=0, keepdims=True)                                  # (1, H)
        p = jnp.exp(a - gmax)                                                     # (E, H)
        p_b = p.astype(bf16)
        ssum = jnp.dot(sdstT, p_b, preferred_element_type=f32)                    # (N, H)
        ssum = jnp.where(ssum <= 0, 1.0, ssum)                 # guard isolated dst nodes
        inv = pl.reciprocal(ssum, approx=True)                                    # (N, H) EUP

        p_wide  = jnp.dot(p_b, hexp, preferred_element_type=f32)                  # (E, HID)
        agg_raw = jnp.dot(sdstT, (vm * p_wide).astype(bf16),
                          preferred_element_type=f32)                             # (N, HID)
        inv_wide = jnp.dot(inv.astype(bf16), hexp, preferred_element_type=f32)    # (N, HID)
        agg = agg_raw * inv_wide

        # ---- typed A-linear (input-folded) + SiLU + skip gate + residual + LN ----
        agg_rep   = jnp.dot(agg.astype(bf16), thid_ref[...],
                            preferred_element_type=f32)                           # (N, T*HID)
        agg_typed = nth * agg_rep.astype(bf16)                                    # exact mask
        ha = jnp.dot(agg_typed, wa_ref[...], preferred_element_type=f32)          # (N, HID)
        ha = ha * pl.reciprocal(1.0 + jnp.exp(-ha), approx=True)  # SiLU; dropout = identity
        skip_sel = jnp.sum(nt_oh * skip_ref[...], axis=1, keepdims=True)          # (N, 1)
        alpha = pl.reciprocal(1.0 + jnp.exp(-skip_sel), approx=True)              # sigmoid
        res = jnp.dot(xv, rw_ref[...], preferred_element_type=f32)                # (N, HID)
        h = ha * alpha + res * (1.0 - alpha)
        mean = jnp.mean(h, axis=-1, keepdims=True)
        var = jnp.mean((h - mean) ** 2, axis=-1, keepdims=True)
        h = (h - mean) * jax.lax.rsqrt(var + LN_EPS)
        o_ref[...] = h * g_ref[...] + b_ref[...]              # single full-width f32 store

    return kernel


# --------------------------- pack-once helpers (numpy) -----------------------------
def _rel_block(W):
    """(H, NE, Dh, Dh) -> (HID, NE*HID): block-diag over heads, relation-major cols."""
    blk = np.zeros((HID_SIZE, NUM_ETYPES * HID_SIZE), np.float32)
    for h in range(NUM_HEADS):
        for r in range(NUM_ETYPES):
            blk[h * HEAD_SIZE:(h + 1) * HEAD_SIZE,
                r * HID_SIZE + h * HEAD_SIZE:r * HID_SIZE + (h + 1) * HEAD_SIZE] = W[h, r]
    return blk


def pack_params(P):
    """Repack layer weights ONCE (host/numpy) into MXU-friendly bf16 operands."""
    T, NE, H, Dh, HID, IN = NUM_NTYPES, NUM_ETYPES, NUM_HEADS, HEAD_SIZE, HID_SIZE, IN_SIZE
    Pn = {k: np.asarray(v, np.float32) for k, v in P.items()}
    bf = jnp.bfloat16

    # block-diagonal typed K|V|Q: rows t*IN..(t+1)*IN hold [Wk_t | Wv_t | Wq_t]
    w_kqv = np.zeros((T * IN, 3 * HID), np.float32)
    for t in range(T):
        w_kqv[t * IN:(t + 1) * IN] = np.concatenate(
            [Pn['Wk'][t], Pn['Wv'][t], Pn['Wq'][t]], axis=1)
    # block-diagonal typed A-linear
    w_a = np.zeros((T * HID, HID), np.float32)
    for t in range(T):
        w_a[t * HID:(t + 1) * HID] = Pn['Wa'][t]
    # relation weights: att | msg stacked -> one (E,64)x(64,256) matmul for all heads/etypes
    w_rel = np.zeros((2 * HID, 2 * NE * HID), np.float32)
    w_rel[:HID, :NE * HID] = _rel_block(Pn['Watt'])
    w_rel[HID:, NE * HID:] = _rel_block(Pn['Wmsg'])
    # head selectors and input replicators (0/1 -> exact in bf16)
    s_exp = np.kron(np.eye(H, dtype=np.float32), np.ones((1, Dh), np.float32))   # (H, HID)
    tile_in = np.tile(np.eye(IN, dtype=np.float32), (1, T))                      # (IN, T*IN)
    tile_hid = np.tile(np.eye(HID, dtype=np.float32), (1, T))                    # (HID, T*HID)
    # TODO(synk): pad packed lane dims to multiples of 128 when scaling up.

    return dict(
        w_kqv=jnp.asarray(w_kqv, bf), w_rel=jnp.asarray(w_rel, bf),
        w_a=jnp.asarray(w_a, bf), rw=jnp.asarray(Pn['rw'], bf),
        s_sum=jnp.asarray(s_exp.T, bf), s_exp=jnp.asarray(s_exp, bf),
        tile_in=jnp.asarray(tile_in, bf), tile_hid=jnp.asarray(tile_hid, bf),
        pri_t=jnp.asarray(Pn['pri'].T, bf),
        skip=jnp.asarray(Pn['skip'].reshape(1, T), jnp.float32),
        gamma=jnp.asarray(Pn['gamma'].reshape(1, HID), jnp.float32),
        beta=jnp.asarray(Pn['beta'].reshape(1, HID), jnp.float32),
    )


def pack_graph(ntype, etype, src, dst, num_nodes):
    """One-hot / kron-expanded graph structure, built ONCE per graph (numpy, bf16)."""
    ntype, etype = np.asarray(ntype), np.asarray(etype)
    src, dst = np.asarray(src), np.asarray(dst)
    T, NE, IN, HID = NUM_NTYPES, NUM_ETYPES, IN_SIZE, HID_SIZE
    bf = jnp.bfloat16

    def onehot(idx, depth):
        m = np.zeros((idx.shape[0], depth), np.float32)
        m[np.arange(idx.shape[0]), idx] = 1.0
        return m

    nt = onehot(ntype, T)
    sdst = onehot(dst, num_nodes)
    return dict(
        nt_oh=jnp.asarray(nt, bf),
        ntx=jnp.asarray(np.kron(nt, np.ones((1, IN), np.float32)), bf),
        nth=jnp.asarray(np.kron(nt, np.ones((1, HID), np.float32)), bf),
        et_oh=jnp.asarray(onehot(etype, NE), bf),
        ssrc=jnp.asarray(onehot(src, num_nodes), bf),
        sdst=jnp.asarray(sdst, bf),
        sdst_t=jnp.asarray(sdst.T, bf),
    )


# ---------------------------------- forward wrapper --------------------------------
def graph_transformer_forward(x, G, W):
    N = x.shape[0]
    kernel = _make_fused_kernel(NUM_ETYPES, HID_SIZE)
    vmem = pl.BlockSpec(memory_space=pltpu.MemorySpace.VMEM)
    # Gridless single call: everything stays resident in VMEM at this size.
    # TODO(synk): when scaling, tile over E / N with a grid and
    # dimension_semantics=("parallel", ...) (v7x has 2 TensorCores, 64 MiB VMEM) and
    # set an explicit vmem_limit_bytes.
    return pl.pallas_call(
        kernel,
        out_shape=jax.ShapeDtypeStruct((N, HID_SIZE), jnp.float32),
        in_specs=[vmem] * 20,
        out_specs=vmem,
    )(x.astype(jnp.bfloat16), G['nt_oh'], G['ntx'], G['nth'], G['et_oh'],
      G['ssrc'], G['sdst'], G['sdst_t'],
      W['tile_in'], W['tile_hid'], W['w_kqv'], W['w_rel'], W['pri_t'],
      W['s_sum'], W['s_exp'], W['w_a'], W['skip'], W['rw'], W['gamma'], W['beta'])


# ------------------------------- pure-JAX reference --------------------------------
def reference_forward(x, ntype, etype, src, dst, P):
    N = x.shape[0]
    H, Dh = NUM_HEADS, HEAD_SIZE
    k = jnp.einsum('ni,nio->no', x, P['Wk'][ntype]).reshape(N, H, Dh)
    q = jnp.einsum('ni,nio->no', x, P['Wq'][ntype]).reshape(N, H, Dh)
    v = jnp.einsum('ni,nio->no', x, P['Wv'][ntype]).reshape(N, H, Dh)
    ke, qe, ve = k[src], q[dst], v[src]
    kw = jnp.einsum('ehd,hedf->ehf', ke, P['Watt'][:, etype])
    a = jnp.sum(kw * qe, -1) * P['pri'][:, etype].T / SQRT_D           # (E,H)
    mw = jnp.einsum('ehd,hedf->ehf', ve, P['Wmsg'][:, etype])          # (E,H,Dh)
    mx = jax.ops.segment_max(a, dst, num_segments=N)
    p = jnp.exp(a - mx[dst])
    s = jax.ops.segment_sum(p, dst, num_segments=N)
    wgt = p / s[dst]
    ht = jax.ops.segment_sum(wgt[:, :, None] * mw, dst, num_segments=N).reshape(N, H * Dh)
    ha = jnp.einsum('ni,nio->no', ht, P['Wa'][ntype])
    ha = ha * jax.nn.sigmoid(ha)
    alpha = jax.nn.sigmoid(P['skip'][ntype])[:, None]
    h = ha * alpha + (x @ P['rw']) * (1.0 - alpha)
    mean = h.mean(-1, keepdims=True)
    var = ((h - mean) ** 2).mean(-1, keepdims=True)
    h = (h - mean) / jnp.sqrt(var + LN_EPS)
    return h * P['gamma'][None, :] + P['beta'][None, :]


# --------------------------------------- main --------------------------------------
if __name__ == "__main__":
    key = jax.random.PRNGKey(0)
    keys = jax.random.split(key, 16)
    N, E = 8, 16

    x = jax.random.normal(keys[0], (N, IN_SIZE), jnp.float32)
    ntype = jax.random.randint(keys[1], (N,), 0, NUM_NTYPES)
    etype = jax.random.randint(keys[2], (E,), 0, NUM_ETYPES)
    src = jax.random.randint(keys[3], (E,), 0, N)
    # every node gets at least one incoming edge
    dst = jnp.concatenate(
        [jnp.arange(N, dtype=jnp.int32),
         jax.random.randint(keys[4], (E - N,), 0, N, dtype=jnp.int32)])

    def w(k_, shape, scale=0.2):
        return scale * jax.random.normal(k_, shape, jnp.float32)

    params = dict(
        Wk=w(keys[5],  (NUM_NTYPES, IN_SIZE, HID_SIZE)),
        Wq=w(keys[6],  (NUM_NTYPES, IN_SIZE, HID_SIZE)),
        Wv=w(keys[7],  (NUM_NTYPES, IN_SIZE, HID_SIZE)),
        Wa=w(keys[8],  (NUM_NTYPES, HID_SIZE, HID_SIZE)),
        Watt=w(keys[9],  (NUM_HEADS, NUM_ETYPES, HEAD_SIZE, HEAD_SIZE)),
        Wmsg=w(keys[10], (NUM_HEADS, NUM_ETYPES, HEAD_SIZE, HEAD_SIZE)),
        pri=1.0 + w(keys[11], (NUM_HEADS, NUM_ETYPES), 0.1),
        skip=w(keys[12], (NUM_NTYPES,), 1.0),
        rw=w(keys[13], (IN_SIZE, HID_SIZE)),        # residual_w (in_size != hid_size)
        gamma=1.0 + w(keys[14], (HID_SIZE,), 0.1),  # LayerNorm weight
        beta=w(keys[15], (HID_SIZE,), 0.1),         # LayerNorm bias
    )

    # pack once per layer / once per graph (hoisted out of the forward call)
    W = pack_params(params)
    G = pack_graph(ntype, etype, src, dst, N)

    out = graph_transformer_forward(x, G, W)
    out = jax.block_until_ready(out)

    ref = reference_forward(x, ntype, etype, src, dst, params)
    np.testing.assert_allclose(np.asarray(out), np.asarray(ref), rtol=5e-2, atol=5e-2)

    print("KERNEL_OK")
</pallas_src>

<mosaic_0001>
module attributes {stable_mosaic.version = 11 : i64} {
  func.func @kernel(%arg0: memref<8x16xbf16, #tpu.memory_space<vmem>>, %arg1: memref<8x3xbf16, #tpu.memory_space<vmem>>, %arg2: memref<8x48xbf16, #tpu.memory_space<vmem>>, %arg3: memref<8x96xbf16, #tpu.memory_space<vmem>>, %arg4: memref<16x4xbf16, #tpu.memory_space<vmem>>, %arg5: memref<16x8xbf16, #tpu.memory_space<vmem>>, %arg6: memref<16x8xbf16, #tpu.memory_space<vmem>>, %arg7: memref<8x16xbf16, #tpu.memory_space<vmem>>, %arg8: memref<16x48xbf16, #tpu.memory_space<vmem>>, %arg9: memref<32x96xbf16, #tpu.memory_space<vmem>>, %arg10: memref<48x96xbf16, #tpu.memory_space<vmem>>, %arg11: memref<64x256xbf16, #tpu.memory_space<vmem>>, %arg12: memref<4x2xbf16, #tpu.memory_space<vmem>>, %arg13: memref<32x2xbf16, #tpu.memory_space<vmem>>, %arg14: memref<2x32xbf16, #tpu.memory_space<vmem>>, %arg15: memref<96x32xbf16, #tpu.memory_space<vmem>>, %arg16: memref<1x3xf32, #tpu.memory_space<vmem>>, %arg17: memref<16x32xbf16, #tpu.memory_space<vmem>>, %arg18: memref<1x32xf32, #tpu.memory_space<vmem>>, %arg19: memref<1x32xf32, #tpu.memory_space<vmem>>, %arg20: memref<8x32xf32, #tpu.memory_space<vmem>>) attributes {dimension_semantics = [], scalar_prefetch = 0 : i64, scratch_operands = 0 : i64, tpu.core_type = #tpu.core_type<tc>} {
    %c0 = arith.constant 0 : index
    %c0_0 = arith.constant 0 : index
    %0 = vector.load %arg0[%c0, %c0_0] : memref<8x16xbf16, #tpu.memory_space<vmem>>, vector<8x16xbf16>
    %c0_1 = arith.constant 0 : index
    %c0_2 = arith.constant 0 : index
    %1 = vector.load %arg1[%c0_1, %c0_2] : memref<8x3xbf16, #tpu.memory_space<vmem>>, vector<8x3xbf16>
    %c0_3 = arith.constant 0 : index
    %c0_4 = arith.constant 0 : index
    %2 = vector.load %arg2[%c0_3, %c0_4] : memref<8x48xbf16, #tpu.memory_space<vmem>>, vector<8x48xbf16>
    %c0_5 = arith.constant 0 : index
    %c0_6 = arith.constant 0 : index
    %3 = vector.load %arg3[%c0_5, %c0_6] : memref<8x96xbf16, #tpu.memory_space<vmem>>, vector<8x96xbf16>
    %c0_7 = arith.constant 0 : index
    %c0_8 = arith.constant 0 : index
    %4 = vector.load %arg4[%c0_7, %c0_8] : memref<16x4xbf16, #tpu.memory_space<vmem>>, vector<16x4xbf16>
    %c0_9 = arith.constant 0 : index
    %c0_10 = arith.constant 0 : index
    %5 = vector.load %arg5[%c0_9, %c0_10] : memref<16x8xbf16, #tpu.memory_space<vmem>>, vector<16x8xbf16>
    %c0_11 = arith.constant 0 : index
    %c0_12 = arith.constant 0 : index
    %6 = vector.load %arg6[%c0_11, %c0_12] : memref<16x8xbf16, #tpu.memory_space<vmem>>, vector<16x8xbf16>
    %c0_13 = arith.constant 0 : index
    %c0_14 = arith.constant 0 : index
    %7 = vector.load %arg7[%c0_13, %c0_14] : memref<8x16xbf16, #tpu.memory_space<vmem>>, vector<8x16xbf16>
    %c0_15 = arith.constant 0 : index
    %c0_16 = arith.constant 0 : index
    %8 = vector.load %arg14[%c0_15, %c0_16] : memref<2x32xbf16, #tpu.memory_space<vmem>>, vector<2x32xbf16>
    %c0_17 = arith.constant 0 : index
    %c0_18 = arith.constant 0 : index
    %9 = vector.load %arg8[%c0_17, %c0_18] : memref<16x48xbf16, #tpu.memory_space<vmem>>, vector<16x48xbf16>
    %cst = arith.constant dense<0.000000e+00> : vector<8x48xf32>
    %10 = tpu.matmul %0, %9, %cst {dimension_numbers = #tpu.dot_dimension_numbers<[1], [0], [0], [1], [0, 0, 1, 1], [], []>} : vector<8x16xbf16>, vector<16x48xbf16>, vector<8x48xf32> -> vector<8x48xf32>
    %11 = arith.truncf %10 : vector<8x48xf32> to vector<8x48xbf16>
    %12 = arith.mulf %2, %11 : vector<8x48xbf16>
    %c0_19 = arith.constant 0 : index
    %c0_20 = arith.constant 0 : index
    %13 = vector.load %arg10[%c0_19, %c0_20] : memref<48x96xbf16, #tpu.memory_space<vmem>>, vector<48x96xbf16>
    %cst_21 = arith.constant dense<0.000000e+00> : vector<8x96xf32>
    %14 = tpu.matmul %12, %13, %cst_21 {dimension_numbers = #tpu.dot_dimension_numbers<[1], [0], [0], [1], [0, 0, 1, 1], [], []>} : vector<8x48xbf16>, vector<48x96xbf16>, vector<8x96xf32> -> vector<8x96xf32>
    %15 = arith.truncf %14 : vector<8x96xf32> to vector<8x96xbf16>
    %16 = vector.extract_strided_slice %15 {offsets = [0, 0], sizes = [8, 64], strides = [1, 1]} : vector<8x96xbf16> to vector<8x64xbf16>
    %cst_22 = arith.constant dense<0.000000e+00> : vector<16x64xf32>
    %17 = tpu.matmul %5, %16, %cst_22 {dimension_numbers = #tpu.dot_dimension_numbers<[1], [0], [0], [1], [0, 0, 1, 1], [], []>} : vector<16x8xbf16>, vector<8x64xbf16>, vector<16x64xf32> -> vector<16x64xf32>
    %18 = vector.extract_strided_slice %15 {offsets = [0, 64], sizes = [8, 32], strides = [1, 1]} : vector<8x96xbf16> to vector<8x32xbf16>
    %cst_23 = arith.constant dense<0.000000e+00> : vector<16x32xf32>
    %19 = tpu.matmul %6, %18, %cst_23 {dimension_numbers = #tpu.dot_dimension_numbers<[1], [0], [0], [1], [0, 0, 1, 1], [], []>} : vector<16x8xbf16>, vector<8x32xbf16>, vector<16x32xf32> -> vector<16x32xf32>
    %20 = arith.truncf %17 : vector<16x64xf32> to vector<16x64xbf16>
    %c0_24 = arith.constant 0 : index
    %c0_25 = arith.constant 0 : index
    %21 = vector.load %arg11[%c0_24, %c0_25] : memref<64x256xbf16, #tpu.memory_space<vmem>>, vector<64x256xbf16>
    %cst_26 = arith.constant dense<0.000000e+00> : vector<16x256xf32>
    %22 = tpu.matmul %20, %21, %cst_26 {dimension_numbers = #tpu.dot_dimension_numbers<[1], [0], [0], [1], [0, 0, 1, 1], [], []>} : vector<16x64xbf16>, vector<64x256xbf16>, vector<16x256xf32> -> vector<16x256xf32>
    %23 = vector.extract_strided_slice %4 {offsets = [0, 0], sizes = [16, 1], strides = [1, 1]} : vector<16x4xbf16> to vector<16x1xbf16>
    %24 = vector.extract_strided_slice %22 {offsets = [0, 0], sizes = [16, 32], strides = [1, 1]} : vector<16x256xf32> to vector<16x32xf32>
    %25 = arith.extf %23 : vector<16x1xbf16> to vector<16x1xf32>
    %26 = vector.broadcast %25 : vector<16x1xf32> to vector<16x32xf32>
    %27 = arith.mulf %26, %24 : vector<16x32xf32>
    %28 = vector.extract_strided_slice %4 {offsets = [0, 0], sizes = [16, 1], strides = [1, 1]} : vector<16x4xbf16> to vector<16x1xbf16>
    %29 = vector.extract_strided_slice %22 {offsets = [0, 128], sizes = [16, 32], strides = [1, 1]} : vector<16x256xf32> to vector<16x32xf32>
    %30 = arith.extf %28 : vector<16x1xbf16> to vector<16x1xf32>
    %31 = vector.broadcast %30 : vector<16x1xf32> to vector<16x32xf32>
    %32 = arith.mulf %31, %29 : vector<16x32xf32>
    %33 = vector.extract_strided_slice %4 {offsets = [0, 1], sizes = [16, 1], strides = [1, 1]} : vector<16x4xbf16> to vector<16x1xbf16>
    %34 = vector.extract_strided_slice %22 {offsets = [0, 32], sizes = [16, 32], strides = [1, 1]} : vector<16x256xf32> to vector<16x32xf32>
    %35 = arith.extf %33 : vector<16x1xbf16> to vector<16x1xf32>
    %36 = vector.broadcast %35 : vector<16x1xf32> to vector<16x32xf32>
    %37 = arith.mulf %36, %34 : vector<16x32xf32>
    %38 = arith.addf %27, %37 : vector<16x32xf32>
    %39 = vector.extract_strided_slice %22 {offsets = [0, 160], sizes = [16, 32], strides = [1, 1]} : vector<16x256xf32> to vector<16x32xf32>
    %40 = arith.extf %33 : vector<16x1xbf16> to vector<16x1xf32>
    %41 = vector.broadcast %40 : vector<16x1xf32> to vector<16x32xf32>
    %42 = arith.mulf %41, %39 : vector<16x32xf32>
    %43 = arith.addf %32, %42 : vector<16x32xf32>
    %44 = vector.extract_strided_slice %4 {offsets = [0, 2], sizes = [16, 1], strides = [1, 1]} : vector<16x4xbf16> to vector<16x1xbf16>
    %45 = vector.extract_strided_slice %22 {offsets = [0, 64], sizes = [16, 32], strides = [1, 1]} : vector<16x256xf32> to vector<16x32xf32>
    %46 = arith.extf %44 : vector<16x1xbf16> to vector<16x1xf32>
    %47 = vector.broadcast %46 : vector<16x1xf32> to vector<16x32xf32>
    %48 = arith.mulf %47, %45 : vector<16x32xf32>
    %49 = arith.addf %38, %48 : vector<16x32xf32>
    %50 = vector.extract_strided_slice %22 {offsets = [0, 192], sizes = [16, 32], strides = [1, 1]} : vector<16x256xf32> to vector<16x32xf32>
    %51 = arith.extf %44 : vector<16x1xbf16> to vector<16x1xf32>
    %52 = vector.broadcast %51 : vector<16x1xf32> to vector<16x32xf32>
    %53 = arith.mulf %52, %50 : vector<16x32xf32>
    %54 = arith.addf %43, %53 : vector<16x32xf32>
    %55 = vector.extract_strided_slice %4 {offsets = [0, 3], sizes = [16, 1], strides = [1, 1]} : vector<16x4xbf16> to vector<16x1xbf16>
    %56 = vector.extract_strided_slice %22 {offsets = [0, 96], sizes = [16, 32], strides = [1, 1]} : vector<16x256xf32> to vector<16x32xf32>
    %57 = arith.extf %55 : vector<16x1xbf16> to vector<16x1xf32>
    %58 = vector.broadcast %57 : vector<16x1xf32> to vector<16x32xf32>
    %59 = arith.mulf %58, %56 : vector<16x32xf32>
    %60 = arith.addf %49, %59 : vector<16x32xf32>
    %61 = vector.extract_strided_slice %22 {offsets = [0, 224], sizes = [16, 32], strides = [1, 1]} : vector<16x256xf32> to vector<16x32xf32>
    %62 = arith.extf %55 : vector<16x1xbf16> to vector<16x1xf32>
    %63 = vector.broadcast %62 : vector<16x1xf32> to vector<16x32xf32>
    %64 = arith.mulf %63, %61 : vector<16x32xf32>
    %65 = arith.addf %54, %64 : vector<16x32xf32>
    %c0_27 = arith.constant 0 : index
    %c0_28 = arith.constant 0 : index
    %66 = vector.load %arg12[%c0_27, %c0_28] : memref<4x2xbf16, #tpu.memory_space<vmem>>, vector<4x2xbf16>
    %cst_29 = arith.constant dense<0.000000e+00> : vector<16x2xf32>
    %67 = tpu.matmul %4, %66, %cst_29 {dimension_numbers = #tpu.dot_dimension_numbers<[1], [0], [0], [1], [0, 0, 1, 1], [], []>} : vector<16x4xbf16>, vector<4x2xbf16>, vector<16x2xf32> -> vector<16x2xf32>
    %68 = arith.mulf %60, %19 : vector<16x32xf32>
    %69 = arith.truncf %68 : vector<16x32xf32> to vector<16x32xbf16>
    %c0_30 = arith.constant 0 : index
    %c0_31 = arith.constant 0 : index
    %70 = vector.load %arg13[%c0_30, %c0_31] : memref<32x2xbf16, #tpu.memory_space<vmem>>, vector<32x2xbf16>
    %cst_32 = arith.constant dense<0.000000e+00> : vector<16x2xf32>
    %71 = tpu.matmul %69, %70, %cst_32 {dimension_numbers = #tpu.dot_dimension_numbers<[1], [0], [0], [1], [0, 0, 1, 1], [], []>} : vector<16x32xbf16>, vector<32x2xbf16>, vector<16x2xf32> -> vector<16x2xf32>
    %72 = arith.mulf %71, %67 : vector<16x2xf32>
    %cst_33 = arith.constant 2.500000e-01 : f32
    %73 = vector.broadcast %cst_33 : f32 to vector<16x2xf32>
    %74 = arith.mulf %72, %73 : vector<16x2xf32>
    %cst_34 = arith.constant dense<0xFF800000> : vector<2xf32>
    %75 = vector.multi_reduction <maximumf>, %74, %cst_34 [0] : vector<16x2xf32> to vector<2xf32>
    %76 = vector.shape_cast %75 : vector<2xf32> to vector<1x2xf32>
    %77 = vector.broadcast %76 : vector<1x2xf32> to vector<16x2xf32>
    %78 = arith.subf %74, %77 : vector<16x2xf32>
    %79 = math.exp %78 : vector<16x2xf32>
    %80 = arith.truncf %79 : vector<16x2xf32> to vector<16x2xbf16>
    %cst_35 = arith.constant dense<0.000000e+00> : vector<8x2xf32>
    %81 = tpu.matmul %7, %80, %cst_35 {dimension_numbers = #tpu.dot_dimension_numbers<[1], [0], [0], [1], [0, 0, 1, 1], [], []>} : vector<8x16xbf16>, vector<16x2xbf16>, vector<8x2xf32> -> vector<8x2xf32>
    %cst_36 = arith.constant 0.000000e+00 : f32
    %82 = vector.broadcast %cst_36 : f32 to vector<8x2xf32>
    %83 = arith.cmpf ole, %81, %82 : vector<8x2xf32>
    %cst_37 = arith.constant 1.000000e+00 : f32
    %84 = vector.broadcast %cst_37 : f32 to vector<8x2xf32>
    %85 = arith.select %83, %84, %81 : vector<8x2xi1>, vector<8x2xf32>
    %86 = tpu.reciprocal %85 {approx = true} : vector<8x2xf32> -> vector<8x2xf32>
    %cst_38 = arith.constant dense<0.000000e+00> : vector<16x32xf32>
    %87 = tpu.matmul %80, %8, %cst_38 {dimension_numbers = #tpu.dot_dimension_numbers<[1], [0], [0], [1], [0, 0, 1, 1], [], []>} : vector<16x2xbf16>, vector<2x32xbf16>, vector<16x32xf32> -> vector<16x32xf32>
    %88 = arith.mulf %65, %87 : vector<16x32xf32>
    %89 = arith.truncf %88 : vector<16x32xf32> to vector<16x32xbf16>
    %cst_39 = arith.constant dense<0.000000e+00> : vector<8x32xf32>
    %90 = tpu.matmul %7, %89, %cst_39 {dimension_numbers = #tpu.dot_dimension_numbers<[1], [0], [0], [1], [0, 0, 1, 1], [], []>} : vector<8x16xbf16>, vector<16x32xbf16>, vector<8x32xf32> -> vector<8x32xf32>
    %91 = arith.truncf %86 : vector<8x2xf32> to vector<8x2xbf16>
    %cst_40 = arith.constant dense<0.000000e+00> : vector<8x32xf32>
    %92 = tpu.matmul %91, %8, %cst_40 {dimension_numbers = #tpu.dot_dimension_numbers<[1], [0], [0], [1], [0, 0, 1, 1], [], []>} : vector<8x2xbf16>, vector<2x32xbf16>, vector<8x32xf32> -> vector<8x32xf32>
    %93 = arith.mulf %90, %92 : vector<8x32xf32>
    %94 = arith.truncf %93 : vector<8x32xf32> to vector<8x32xbf16>
    %c0_41 = arith.constant 0 : index
    %c0_42 = arith.constant 0 : index
    %95 = vector.load %arg9[%c0_41, %c0_42] : memref<32x96xbf16, #tpu.memory_space<vmem>>, vector<32x96xbf16>
    %cst_43 = arith.constant dense<0.000000e+00> : vector<8x96xf32>
    %96 = tpu.matmul %94, %95, %cst_43 {dimension_numbers = #tpu.dot_dimension_numbers<[1], [0], [0], [1], [0, 0, 1, 1], [], []>} : vector<8x32xbf16>, vector<32x96xbf16>, vector<8x96xf32> -> vector<8x96xf32>
    %97 = arith.truncf %96 : vector<8x96xf32> to vector<8x96xbf16>
    %98 = arith.mulf %3, %97 : vector<8x96xbf16>
    %c0_44 = arith.constant 0 : index
    %c0_45 = arith.constant 0 : index
    %99 = vector.load %arg15[%c0_44, %c0_45] : memref<96x32xbf16, #tpu.memory_space<vmem>>, vector<96x32xbf16>
    %cst_46 = arith.constant dense<0.000000e+00> : vector<8x32xf32>
    %100 = tpu.matmul %98, %99, %cst_46 {dimension_numbers = #tpu.dot_dimension_numbers<[1], [0], [0], [1], [0, 0, 1, 1], [], []>} : vector<8x96xbf16>, vector<96x32xbf16>, vector<8x32xf32> -> vector<8x32xf32>
    %cst_47 = arith.constant 0.000000e+00 : f32
    %101 = vector.broadcast %cst_47 : f32 to vector<8x32xf32>
    %102 = arith.subf %101, %100 : vector<8x32xf32>
    %103 = math.exp %102 : vector<8x32xf32>
    %cst_48 = arith.constant 1.000000e+00 : f32
    %104 = vector.broadcast %cst_48 : f32 to vector<8x32xf32>
    %105 = arith.addf %104, %103 : vector<8x32xf32>
    %106 = tpu.reciprocal %105 {approx = true} : vector<8x32xf32> -> vector<8x32xf32>
    %107 = arith.mulf %100, %106 : vector<8x32xf32>
    %c0_49 = arith.constant 0 : index
    %c0_50 = arith.constant 0 : index
    %108 = vector.load %arg16[%c0_49, %c0_50] : memref<1x3xf32, #tpu.memory_space<vmem>>, vector<1x3xf32>
    %109 = arith.extf %1 : vector<8x3xbf16> to vector<8x3xf32>
    %110 = vector.broadcast %108 : vector<1x3xf32> to vector<8x3xf32>
    %111 = arith.mulf %109, %110 : vector<8x3xf32>
    %cst_51 = arith.constant dense<0.000000e+00> : vector<8xf32>
    %112 = vector.multi_reduction <add>, %111, %cst_51 [1] : vector<8x3xf32> to vector<8xf32>
    %113 = vector.shape_cast %112 : vector<8xf32> to vector<8x1xf32>
    %cst_52 = arith.constant 0.000000e+00 : f32
    %114 = vector.broadcast %cst_52 : f32 to vector<8x1xf32>
    %115 = arith.subf %114, %113 : vector<8x1xf32>
    %116 = math.exp %115 : vector<8x1xf32>
    %cst_53 = arith.constant 1.000000e+00 : f32
    %117 = vector.broadcast %cst_53 : f32 to vector<8x1xf32>
    %118 = arith.addf %117, %116 : vector<8x1xf32>
    %119 = tpu.reciprocal %118 {approx = true} : vector<8x1xf32> -> vector<8x1xf32>
    %c0_54 = arith.constant 0 : index
    %c0_55 = arith.constant 0 : index
    %120 = vector.load %arg17[%c0_54, %c0_55] : memref<16x32xbf16, #tpu.memory_space<vmem>>, vector<16x32xbf16>
    %cst_56 = arith.constant dense<0.000000e+00> : vector<8x32xf32>
    %121 = tpu.matmul %0, %120, %cst_56 {dimension_numbers = #tpu.dot_dimension_numbers<[1], [0], [0], [1], [0, 0, 1, 1], [], []>} : vector<8x16xbf16>, vector<16x32xbf16>, vector<8x32xf32> -> vector<8x32xf32>
    %122 = vector.broadcast %119 : vector<8x1xf32> to vector<8x32xf32>
    %123 = arith.mulf %107, %122 : vector<8x32xf32>
    %cst_57 = arith.constant 1.000000e+00 : f32
    %124 = vector.broadcast %cst_57 : f32 to vector<8x1xf32>
    %125 = arith.subf %124, %119 : vector<8x1xf32>
    %126 = vector.broadcast %125 : vector<8x1xf32> to vector<8x32xf32>
    %127 = arith.mulf %121, %126 : vector<8x32xf32>
    %128 = arith.addf %123, %127 : vector<8x32xf32>
    %cst_58 = arith.constant dense<0.000000e+00> : vector<8xf32>
    %129 = vector.multi_reduction <add>, %128, %cst_58 [1] : vector<8x32xf32> to vector<8xf32>
    %130 = vector.shape_cast %129 : vector<8xf32> to vector<8x1xf32>
    %cst_59 = arith.constant 3.200000e+01 : f32
    %131 = vector.broadcast %cst_59 : f32 to vector<8x1xf32>
    %132 = arith.divf %130, %131 : vector<8x1xf32>
    %133 = vector.broadcast %132 : vector<8x1xf32> to vector<8x32xf32>
    %134 = arith.subf %128, %133 : vector<8x32xf32>
    %135 = arith.mulf %134, %134 : vector<8x32xf32>
    %cst_60 = arith.constant dense<0.000000e+00> : vector<8xf32>
    %136 = vector.multi_reduction <add>, %135, %cst_60 [1] : vector<8x32xf32> to vector<8xf32>
    %137 = vector.shape_cast %136 : vector<8xf32> to vector<8x1xf32>
    %cst_61 = arith.constant 3.200000e+01 : f32
    %138 = vector.broadcast %cst_61 : f32 to vector<8x1xf32>
    %139 = arith.divf %137, %138 : vector<8x1xf32>
    %140 = vector.broadcast %132 : vector<8x1xf32> to vector<8x32xf32>
    %141 = arith.subf %128, %140 : vector<8x32xf32>
    %cst_62 = arith.constant 9.99999974E-6 : f32
    %142 = vector.broadcast %cst_62 : f32 to vector<8x1xf32>
    %143 = arith.addf %139, %142 : vector<8x1xf32>
    %144 = math.rsqrt %143 : vector<8x1xf32>
    %145 = vector.broadcast %144 : vector<8x1xf32> to vector<8x32xf32>
    %146 = arith.mulf %141, %145 : vector<8x32xf32>
    %c0_63 = arith.constant 0 : index
    %c0_64 = arith.constant 0 : index
    %147 = vector.load %arg18[%c0_63, %c0_64] : memref<1x32xf32, #tpu.memory_space<vmem>>, vector<1x32xf32>
    %148 = vector.broadcast %147 : vector<1x32xf32> to vector<8x32xf32>
    %149 = arith.mulf %146, %148 : vector<8x32xf32>
    %c0_65 = arith.constant 0 : index
    %c0_66 = arith.constant 0 : index
    %150 = vector.load %arg19[%c0_65, %c0_66] : memref<1x32xf32, #tpu.memory_space<vmem>>, vector<1x32xf32>
    %151 = vector.broadcast %150 : vector<1x32xf32> to vector<8x32xf32>
    %152 = arith.addf %149, %151 : vector<8x32xf32>
    %c0_67 = arith.constant 0 : index
    %c0_68 = arith.constant 0 : index
    %153 = vector.load %arg20[%c0_67, %c0_68] : memref<8x32xf32, #tpu.memory_space<vmem>>, vector<8x32xf32>
    tpu.vector_store %arg20[%c0_67, %c0_68], %152 {strides = array<i32>} : memref<8x32xf32, #tpu.memory_space<vmem>>, vector<8x32xf32>,
    return
  }
}

</mosaic_0001>

<llo_original>
// kernel: tpu_custom_call.1
$region0: #{tpu_custom_call.1}
  #allocation0 [shape = 'u32[]', space=smem, size = 0x4, offset = 0x4, fixed_abs, tag = 'smem constant byte address 0x4 - core index']
  #allocation1 [shape = 'u32[72,128]{1,0:T(1,128)}', space=vmem, size = 0x9000, scoped, tag = 'internal scratch']
  %s0 = inlined_call_operand.vmem [shape: bf16[8,16], index: 0, kind: input, shape index: {}]
  %s1 = inlined_call_operand.vmem [shape: bf16[8,3], index: 1, kind: input, shape index: {}]
  %s2 = inlined_call_operand.hbm [shape: bf16[8,48], index: 2, kind: input, shape index: {}]
  %s3 = inlined_call_operand.hbm [shape: bf16[8,96], index: 3, kind: input, shape index: {}]
  %s4 = inlined_call_operand.vmem [shape: bf16[16,4], index: 4, kind: input, shape index: {}]
  %s5 = inlined_call_operand.vmem [shape: bf16[16,8], index: 5, kind: input, shape index: {}]
  %s6 = inlined_call_operand.vmem [shape: bf16[16,8], index: 6, kind: input, shape index: {}]
  %s7 = inlined_call_operand.hbm [shape: bf16[8,16], index: 7, kind: input, shape index: {}]
  %s8 = inlined_call_operand.vmem [shape: bf16[16,48], index: 8, kind: input, shape index: {}]
  %s9 = inlined_call_operand.vmem [shape: bf16[32,96], index: 9, kind: input, shape index: {}]
  %s10 = inlined_call_operand.hbm [shape: bf16[48,96], index: 10, kind: input, shape index: {}]
  %s11 = inlined_call_operand.vmem [shape: bf16[64,256], index: 11, kind: input, shape index: {}]
  %s12 = inlined_call_operand.vmem [shape: bf16[4,2], index: 12, kind: input, shape index: {}]
  %s13 = inlined_call_operand.vmem [shape: bf16[32,2], index: 13, kind: input, shape index: {}]
  %s14 = inlined_call_operand.vmem [shape: bf16[2,32], index: 14, kind: input, shape index: {}]
  %s15 = inlined_call_operand.vmem [shape: bf16[96,32], index: 15, kind: input, shape index: {}]
  %s16 = inlined_call_operand.vmem [shape: f32[1,3], index: 16, kind: input, shape index: {}]
  %s17 = inlined_call_operand.vmem [shape: bf16[16,32], index: 17, kind: input, shape index: {}]
  %s18 = inlined_call_operand.vmem [shape: f32[1,32], index: 18, kind: input, shape index: {}]
  %s19 = inlined_call_operand.vmem [shape: f32[1,32], index: 19, kind: input, shape index: {}]
  %s20 = inlined_call_operand.hbm [shape: f32[8,32], index: 20, kind: output, shape index: {}]
  %s21 = sld [smem:[#allocation0]]
  $region106: #{tpu_custom_call.1} parent=0
    _
  %s23 = ssub.s32 1, %s21
  %s24 = scalar_select 0, %s23, %s21
  $region1: #{tpu_custom_call.1} parent=0
    #allocation2 [shape = 'u8[2048]{0}', space=vmem, size = 0x800, scoped, tag = 'input window, operand 2, single buffered']
    #allocation3 [shape = 's32[1]{0}', space=sflag, size = 0x4, scoped, tag = 'scoped memory for tpu_custom_call.1']
    #allocation4 [shape = 's32[1]{0}', space=sflag, size = 0x4, scoped, tag = 'scoped memory for tpu_custom_call.1']
    #allocation5 [shape = 'u8[2048]{0}', space=vmem, size = 0x800, scoped, tag = 'input window, operand 3, single buffered']
    #allocation6 [shape = 's32[1]{0}', space=sflag, size = 0x4, scoped, tag = 'scoped memory for tpu_custom_call.1']
    #allocation7 [shape = 'u8[2048]{0}', space=vmem, size = 0x800, scoped, tag = 'input window, operand 7, single buffered']
    #allocation8 [shape = 'u8[12288]{0}', space=vmem, size = 0x3000, scoped, tag = 'input window, operand 10, single buffered']
    #allocation9 [shape = 's32[1]{0}', space=sflag, size = 0x4, scoped, tag = 'scoped memory for tpu_custom_call.1']
    #allocation10 [shape = 'u8[4096]{0}', space=vmem, size = 0x1000, scoped, tag = 'output window, operand 0, single buffered']
    %25 = vsyncpa [#allocation3], 0
    %26 = vsyncpa [#allocation6], 0
    %27 = vsyncpa [#allocation9], 0
    %28 = vsyncpa [#allocation4], 0
    // Predicated region
    $region2: #{tpu_custom_call.1} parent=1 // pred_check
      _
    $region3: #{tpu_custom_call.1} parent=1 // pred_check_branch
      %30 = sbr.rel (0) target = $region5
    $region4: #{tpu_custom_call.1} parent=1 // pred_region
      _
    $region5: #{tpu_custom_call.1} parent=1 // pred_fallthru
      _
    // Predicated region
    $region6: #{tpu_custom_call.1} parent=1 // pred_check
      _
    $region7: #{tpu_custom_call.1} parent=1 // pred_check_branch
      %32 = sbr.rel (0) target = $region9
    $region8: #{tpu_custom_call.1} parent=1 // pred_region
      _
    $region9: #{tpu_custom_call.1} parent=1 // pred_fallthru
      _
    // Predicated region
    $region10: #{tpu_custom_call.1} parent=1 // pred_check
      _
    $region11: #{tpu_custom_call.1} parent=1 // pred_check_branch
      %34 = sbr.rel (0) target = $region13
    $region12: #{tpu_custom_call.1} parent=1 // pred_region
      %36 = vsyncadd [#allocation3], 0
      %s38 = sshll.u32 %s2, 4
      %s39 = int_to_ptr.hbm [resolvable:$true] %s38
      %s40 = sshll.u32 [#allocation2], 4
      %s41 = int_to_ptr.vmem [resolvable:$true] %s40
      %43 = dma.hbm_to_vmem [thread:$0]  %s39, 64, %s41, [#allocation3]
    $region13: #{tpu_custom_call.1} parent=1 // pred_fallthru
      _
    // Predicated region
    $region14: #{tpu_custom_call.1} parent=1 // pred_check
      _
    $region15: #{tpu_custom_call.1} parent=1 // pred_check_branch
      %45 = sbr.rel (0) target = $region17
    $region16: #{tpu_custom_call.1} parent=1 // pred_region
      %47 = vsyncadd [#allocation6], 0
      %s49 = sshll.u32 %s3, 4
      %s50 = int_to_ptr.hbm [resolvable:$true] %s49
      %s51 = sshll.u32 [#allocation5], 4
      %s52 = int_to_ptr.vmem [resolvable:$true] %s51
      %54 = dma.hbm_to_vmem [thread:$0]  %s50, 64, %s52, [#allocation6]
    $region17: #{tpu_custom_call.1} parent=1 // pred_fallthru
      _
    // Predicated region
    $region18: #{tpu_custom_call.1} parent=1 // pred_check
      _
    $region19: #{tpu_custom_call.1} parent=1 // pred_check_branch
      %56 = sbr.rel (0) target = $region21
    $region20: #{tpu_custom_call.1} parent=1 // pred_region
      _
    $region21: #{tpu_custom_call.1} parent=1 // pred_fallthru
      _
    // Predicated region
    $region22: #{tpu_custom_call.1} parent=1 // pred_check
      _
    $region23: #{tpu_custom_call.1} parent=1 // pred_check_branch
      %58 = sbr.rel (0) target = $region25
    $region24: #{tpu_custom_call.1} parent=1 // pred_region
      _
    $region25: #{tpu_custom_call.1} parent=1 // pred_fallthru
      _
    // Predicated region
    $region26: #{tpu_custom_call.1} parent=1 // pred_check
      _
    $region27: #{tpu_custom_call.1} parent=1 // pred_check_branch
      %60 = sbr.rel (0) target = $region29
    $region28: #{tpu_custom_call.1} parent=1 // pred_region
      _
    $region29: #{tpu_custom_call.1} parent=1 // pred_fallthru
      _
    // Predicated region
    $region30: #{tpu_custom_call.1} parent=1 // pred_check
      _
    $region31: #{tpu_custom_call.1} parent=1 // pred_check_branch
      %62 = sbr.rel (0) target = $region33
    $region32: #{tpu_custom_call.1} parent=1 // pred_region
      %64 = vsyncadd [#allocation6], 0
      %s66 = sshll.u32 %s7, 4
      %s67 = int_to_ptr.hbm [resolvable:$true] %s66
      %s68 = sshll.u32 [#allocation7], 4
      %s69 = int_to_ptr.vmem [resolvable:$true] %s68
      %71 = dma.hbm_to_vmem [thread:$0]  %s67, 64, %s69, [#allocation6]
    $region33: #{tpu_custom_call.1} parent=1 // pred_fallthru
      _
    // Predicated region
    $region34: #{tpu_custom_call.1} parent=1 // pred_check
      _
    $region35: #{tpu_custom_call.1} parent=1 // pred_check_branch
      %73 = sbr.rel (0) target = $region37
    $region36: #{tpu_custom_call.1} parent=1 // pred_region
      _
    $region37: #{tpu_custom_call.1} parent=1 // pred_fallthru
      _
    // Predicated region
    $region38: #{tpu_custom_call.1} parent=1 // pred_check
      _
    $region39: #{tpu_custom_call.1} parent=1 // pred_check_branch
      %75 = sbr.rel (0) target = $region41
    $region40: #{tpu_custom_call.1} parent=1 // pred_region
      _
    $region41: #{tpu_custom_call.1} parent=1 // pred_fallthru
      _
    // Predicated region
    $region42: #{tpu_custom_call.1} parent=1 // pred_check
      _
    $region43: #{tpu_custom_call.1} parent=1 // pred_check_branch
      %77 = sbr.rel (0) target = $region45
    $region44: #{tpu_custom_call.1} parent=1 // pred_region
      %79 = vsyncadd [#allocation9], 0
      %s80 = sshll.u32 %s10, 4
      %s81 = int_to_ptr.hbm [resolvable:$true] %s80
      %s82 = sshll.u32 [#allocation8], 4
      %s83 = int_to_ptr.vmem [resolvable:$true] %s82
      %88 = dma.hbm_to_vmem [thread:$0]  %s81, 384, %s83, [#allocation9], 64, 64, 4
    $region45: #{tpu_custom_call.1} parent=1 // pred_fallthru
      _
    // Predicated region
    $region46: #{tpu_custom_call.1} parent=1 // pred_check
      _
    $region47: #{tpu_custom_call.1} parent=1 // pred_check_branch
      %90 = sbr.rel (0) target = $region49
    $region48: #{tpu_custom_call.1} parent=1 // pred_region
      _
    $region49: #{tpu_custom_call.1} parent=1 // pred_fallthru
      _
    // Predicated region
    $region50: #{tpu_custom_call.1} parent=1 // pred_check
      _
    $region51: #{tpu_custom_call.1} parent=1 // pred_check_branch
      %92 = sbr.rel (0) target = $region53
    $region52: #{tpu_custom_call.1} parent=1 // pred_region
      _
    $region53: #{tpu_custom_call.1} parent=1 // pred_fallthru
      _
    // Predicated region
    $region54: #{tpu_custom_call.1} parent=1 // pred_check
      _
    $region55: #{tpu_custom_call.1} parent=1 // pred_check_branch
      %94 = sbr.rel (0) target = $region57
    $region56: #{tpu_custom_call.1} parent=1 // pred_region
      _
    $region57: #{tpu_custom_call.1} parent=1 // pred_fallthru
      _
    // Predicated region
    $region58: #{tpu_custom_call.1} parent=1 // pred_check
      _
    $region59: #{tpu_custom_call.1} parent=1 // pred_check_branch
      %96 = sbr.rel (0) target = $region61
    $region60: #{tpu_custom_call.1} parent=1 // pred_region
      _
    $region61: #{tpu_custom_call.1} parent=1 // pred_fallthru
      _
    // Predicated region
    $region62: #{tpu_custom_call.1} parent=1 // pred_check
      _
    $region63: #{tpu_custom_call.1} parent=1 // pred_check_branch
      %98 = sbr.rel (0) target = $region65
    $region64: #{tpu_custom_call.1} parent=1 // pred_region
      _
    $region65: #{tpu_custom_call.1} parent=1 // pred_fallthru
      _
    // Predicated region
    $region66: #{tpu_custom_call.1} parent=1 // pred_check
      _
    $region67: #{tpu_custom_call.1} parent=1 // pred_check_branch
      %100 = sbr.rel (0) target = $region69
    $region68: #{tpu_custom_call.1} parent=1 // pred_region
      _
    $region69: #{tpu_custom_call.1} parent=1 // pred_fallthru
      _
    // Predicated region
    $region70: #{tpu_custom_call.1} parent=1 // pred_check
      _
    $region71: #{tpu_custom_call.1} parent=1 // pred_check_branch
      %102 = sbr.rel (0) target = $region73
    $region72: #{tpu_custom_call.1} parent=1 // pred_region
      _
    $region73: #{tpu_custom_call.1} parent=1 // pred_fallthru
      _
    // Predicated region
    $region74: #{tpu_custom_call.1} parent=1 // pred_check
      _
    $region75: #{tpu_custom_call.1} parent=1 // pred_check_branch
      %104 = sbr.rel (0) target = $region77
    $region76: #{tpu_custom_call.1} parent=1 // pred_region
      _
    $region77: #{tpu_custom_call.1} parent=1 // pred_fallthru
      _
    // Predicated region
    $region78: #{tpu_custom_call.1} parent=1 // pred_check
      _
    $region79: #{tpu_custom_call.1} parent=1 // pred_check_branch
      %106 = sbr.rel (0) target = $region81
    $region80: #{tpu_custom_call.1} parent=1 // pred_region
      _
    $region81: #{tpu_custom_call.1} parent=1 // pred_fallthru
      _
    // Predicated region
    $region82: #{tpu_custom_call.1} parent=1 // pred_check
      _
    $region83: #{tpu_custom_call.1} parent=1 // pred_check_branch
      %108 = sbr.rel (0) target = $region85
    $region84: #{tpu_custom_call.1} parent=1 // pred_region
      %110 = dma.done [#allocation3], 64
    $region85: #{tpu_custom_call.1} parent=1 // pred_fallthru
      _
    // Predicated region
    $region86: #{tpu_custom_call.1} parent=1 // pred_check
      _
    $region87: #{tpu_custom_call.1} parent=1 // pred_check_branch
      %112 = sbr.rel (0) target = $region89
    $region88: #{tpu_custom_call.1} parent=1 // pred_region
      %114 = dma.done [#allocation6], 64
    $region89: #{tpu_custom_call.1} parent=1 // pred_fallthru
      _
    // Predicated region
    $region90: #{tpu_custom_call.1} parent=1 // pred_check
      _
    $region91: #{tpu_custom_call.1} parent=1 // pred_check_branch
      %116 = sbr.rel (0) target = $region93
    $region92: #{tpu_custom_call.1} parent=1 // pred_region
      %118 = dma.done [#allocation6], 64
    $region93: #{tpu_custom_call.1} parent=1 // pred_fallthru
      _
    // Predicated region
    $region94: #{tpu_custom_call.1} parent=1 // pred_check
      _
    $region95: #{tpu_custom_call.1} parent=1 // pred_check_branch
      %120 = sbr.rel (0) target = $region97
    $region96: #{tpu_custom_call.1} parent=1 // pred_region
      %122 = dma.done [#allocation9], 384
    $region97: #{tpu_custom_call.1} parent=1 // pred_fallthru
      _
    %v124 = vld [vmem:[%s0] sm:$0xf]
    %v125 = vld [vmem:[%s1] sm:$0xf]
    %v126 = vld [vmem:[#allocation2] sm:$0xf]
    %v127 = vld [vmem:[#allocation5] sm:$0xf]
    %v128 = vld [vmem:[%s4] sm:$0xf]
    %v129 = vld [vmem:[%s4 + $0x4] sm:$0xf]
    %v130 = vld [vmem:[%s5] sm:$0xf]
    %v131 = vld [vmem:[%s5 + $0x4] sm:$0xf]
    %v132 = vld [vmem:[%s6] sm:$0xf]
    %v133 = vld [vmem:[%s6 + $0x4] sm:$0xf]
    %v134 = vld [vmem:[#allocation7] sm:$0xf]
    %v135 = vld [vmem:[%s14] sm:$0x1]
    %v136 = vld [vmem:[%s8] sm:$0xf]
    %v137 = vld [vmem:[%s8 + $0x4] sm:$0xf]
    %v140 = vunpack.c.l.b16 %v136
    %v141 = vunpack.c.l.b16 %v137
    %v142 = vpack.c.b16 %v141, %v140
    %vm144 = vcmask 130048
    %v146 = vsel %vm144, %v124, 0
    %148 = vmatpush.bf16.msra.mxu0 0
    %149 = vmatpush.bf16.msra.mxu0 0
    %150 = vmatpush.bf16.msra.mxu0 0
    %151 = vmatpush.bf16.msra.mxu0 0
    %152 = vmatpush.bf16.msra.mxu0 0
    %153 = vmatpush.bf16.msra.mxu0 0
    %154 = vmatpush.bf16.msra.mxu0 0
    %155 = vmatpush.bf16.msra.mxu0 %v142
    %156 = vmatmul.bf16.gmra.mxu0 %v146
    %v157 = vpop.f32.mrf.mxu0
    %v158 = vadd.f32 0.0, %v157
    %v159 = vpop.f32.mrf.mxu0
    %160 = vdwg.mxu0
    %v161 = vpack.c.bf16 %v158, %v158
    %v162 = vunpack.c.l.bf16 %v126
    %v163 = vunpack.c.l.bf16 %v161
    %v164 = vmul.f32 %v162, %v163
    %v165 = vpack.c.bf16 %v164, %v164
    %v166 = vld [vmem:[#allocation8] sm:$0xf]
    %v167 = vld [vmem:[#allocation8 + $0x4] sm:$0xf]
    %v168 = vld [vmem:[#allocation8 + $0x8] sm:$0xf]
    %v169 = vld [vmem:[#allocation8 + $0xc] sm:$0xf]
    %v170 = vld [vmem:[#allocation8 + $0x10] sm:$0xf]
    %v171 = vld [vmem:[#allocation8 + $0x14] sm:$0xf]
    %v178 = vunpack.c.l.b16 %v166
    %v179 = vunpack.c.l.b16 %v167
    %v180 = vunpack.c.l.b16 %v168
    %v181 = vunpack.c.l.b16 %v169
    %v182 = vunpack.c.l.b16 %v170
    %v183 = vunpack.c.l.b16 %v171
    %v184 = vpack.c.b16 %v179, %v178
    %v185 = vpack.c.b16 %v181, %v180
    %v186 = vpack.c.b16 %v183, %v182
    %vm190 = vcmask 392192
    %v192 = vsel %vm190, %v165, 0
    %194 = vmatpush.bf16.msra.mxu0 0
    %195 = vmatpush.bf16.msra.mxu0 0
    %196 = vmatpush.bf16.msra.mxu0 0
    %197 = vmatpush.bf16.msra.mxu0 0
    %198 = vmatpush.bf16.msra.mxu0 0
    %199 = vmatpush.bf16.msra.mxu0 %v186
    %200 = vmatpush.bf16.msra.mxu0 %v185
    %201 = vmatpush.bf16.msra.mxu0 %v184
    %202 = vmatmul.bf16.gmra.mxu0 %v192
    %v203 = vpop.f32.mrf.mxu0
    %v204 = vadd.f32 0.0, %v203
    %v205 = vpop.f32.mrf.mxu0
    %206 = vdwg.mxu0
    %v207 = vpack.c.bf16 %v204, %v204
    %v210 = vunpack.c.l.b16 %v130
    %v211 = vunpack.c.l.b16 %v131
    %v212 = vpack.c.b16 %v211, %v210
    %vm213 = vcmask 64512
    %v215 = vsel %vm213, %v212, 0
    %vm217 = vcmask 1043456
    %v219 = vsel %vm217, %v207, 0
    %221 = vmatpush.bf16.msra.mxu0 0
    %222 = vmatpush.bf16.msra.mxu0 0
    %223 = vmatpush.bf16.msra.mxu0 0
    %224 = vmatpush.bf16.msra.mxu0 0
    %225 = vmatpush.bf16.msra.mxu0 0
    %226 = vmatpush.bf16.msra.mxu0 0
    %227 = vmatpush.bf16.msra.mxu0 0
    %228 = vmatpush.bf16.msra.mxu0 %v219
    %229 = vmatmul.bf16.gmra.mxu0 %v215
    %v230 = vpop.f32.mrf.mxu0
    %v231 = vadd.f32 0.0, %v230
    %v232 = vpop.f32.mrf.mxu0
    %v233 = vadd.f32 0.0, %v232
    %234 = vdwg.mxu0
    %v237 = vunpack.c.l.b16 %v132
    %v238 = vunpack.c.l.b16 %v133
    %v239 = vpack.c.b16 %v238, %v237
    %v241 = vunpack.c.l.b16 %v207
    %v242 = vpack.c.b16 %v241, %v241
    %243 = vrot.lane.b32.xlu0 %v242, 64
    %v244 = vpop.permute.xlu0 %243
    %v246 = vsel %vm213, %v239, 0
    %v249 = vsel %vm217, %v244, 0
    %251 = vmatpush.bf16.msra.mxu0 0
    %252 = vmatpush.bf16.msra.mxu0 0
    %253 = vmatpush.bf16.msra.mxu0 0
    %254 = vmatpush.bf16.msra.mxu0 0
    %255 = vmatpush.bf16.msra.mxu0 0
    %256 = vmatpush.bf16.msra.mxu0 0
    %257 = vmatpush.bf16.msra.mxu0 0
    %258 = vmatpush.bf16.msra.mxu0 %v249
    %259 = vmatmul.bf16.gmra.mxu0 %v246
    %v260 = vpop.f32.mrf.mxu0
    %v261 = vadd.f32 0.0, %v260
    %v262 = vpop.f32.mrf.mxu0
    %v263 = vadd.f32 0.0, %v262
    %264 = vdwg.mxu0
    %v265 = vpack.c.bf16 %v233, %v231
    %v266 = vld [vmem:[%s11] sm:$0xff]
    %v267 = vld [vmem:[%s11 + $0x8] sm:$0xff]
    %v268 = vld [vmem:[%s11 + $0x10] sm:$0xff]
    %v269 = vld [vmem:[%s11 + $0x18] sm:$0xff]
    %v270 = vld [vmem:[%s11 + $0x20] sm:$0xff]
    %v271 = vld [vmem:[%s11 + $0x28] sm:$0xff]
    %v272 = vld [vmem:[%s11 + $0x30] sm:$0xff]
    %v273 = vld [vmem:[%s11 + $0x38] sm:$0xff]
    %v282 = vunpack.c.l.b16 %v266
    %v283 = vunpack.c.h.b16 %v266
    %v284 = vunpack.c.l.b16 %v267
    %v285 = vunpack.c.h.b16 %v267
    %v286 = vunpack.c.l.b16 %v268
    %v287 = vunpack.c.h.b16 %v268
    %v288 = vunpack.c.l.b16 %v269
    %v289 = vunpack.c.h.b16 %v269
    %v290 = vunpack.c.l.b16 %v270
    %v291 = vunpack.c.h.b16 %v270
    %v292 = vunpack.c.l.b16 %v271
    %v293 = vunpack.c.h.b16 %v271
    %v294 = vunpack.c.l.b16 %v272
    %v295 = vunpack.c.h.b16 %v272
    %v296 = vunpack.c.l.b16 %v273
    %v297 = vunpack.c.h.b16 %v273
    %v298 = vpack.c.b16 %v284, %v282
    %v299 = vpack.c.b16 %v285, %v283
    %v300 = vpack.c.b16 %v288, %v286
    %v301 = vpack.c.b16 %v289, %v287
    %v302 = vpack.c.b16 %v292, %v290
    %v303 = vpack.c.b16 %v293, %v291
    %v304 = vpack.c.b16 %v296, %v294
    %v305 = vpack.c.b16 %v297, %v295
    %vm314 = vcmask 523264
    %v316 = vsel %vm314, %v265, 0
    %318 = vmatpush.bf16.msra.mxu0 0
    %319 = vmatpush.bf16.msra.mxu0 0
    %320 = vmatpush.bf16.msra.mxu0 0
    %321 = vmatpush.bf16.msra.mxu0 0
    %322 = vmatpush.bf16.msra.mxu0 %v304
    %323 = vmatpush.bf16.msra.mxu0 %v302
    %324 = vmatpush.bf16.msra.mxu0 %v300
    %325 = vmatpush.bf16.msra.mxu0 %v298
    %326 = vmatmul.bf16.gmra.mxu0 %v316
    %v327 = vpop.f32.mrf.mxu0
    %v328 = vadd.f32 0.0, %v327
    %v329 = vpop.f32.mrf.mxu0
    %v330 = vadd.f32 0.0, %v329
    %331 = vdwg.mxu0
    %332 = vmatpush.bf16.msra.mxu0 0
    %333 = vmatpush.bf16.msra.mxu0 0
    %334 = vmatpush.bf16.msra.mxu0 0
    %335 = vmatpush.bf16.msra.mxu0 0
    %336 = vmatpush.bf16.msra.mxu0 %v305
    %337 = vmatpush.bf16.msra.mxu0 %v303
    %338 = vmatpush.bf16.msra.mxu0 %v301
    %339 = vmatpush.bf16.msra.mxu0 %v299
    %340 = vmatmul.bf16.gmra.mxu0 %v316
    %v341 = vpop.f32.mrf.mxu0
    %v342 = vadd.f32 0.0, %v341
    %v343 = vpop.f32.mrf.mxu0
    %v344 = vadd.f32 0.0, %v343
    %345 = vdwg.mxu0
    %v346 = vunpack.c.l.bf16 %v128
    %v347 = vunpack.c.l.bf16 %v129
    %349 = vset.pattern.permute.xlu0 0
    %350 = vperm.xlu0 %349, %v346
    %v351 = vpop.permute.xlu0 %350
    %354 = vset.pattern.permute.xlu0 0
    %355 = vperm.xlu0 %354, %v347
    %v356 = vpop.permute.xlu0 %355
    %v358 = vmul.f32 %v351, %v328
    %v359 = vmul.f32 %v356, %v330
    %v360 = vmul.f32 %v351, %v342
    %v361 = vmul.f32 %v356, %v344
    %362 = vset.pattern.permute.xlu0 1
    %363 = vperm.xlu0 %362, %v346
    %v364 = vpop.permute.xlu0 %363
    %366 = vset.pattern.permute.xlu0 1
    %367 = vperm.xlu0 %366, %v347
    %v368 = vpop.permute.xlu0 %367
    %v370 = vmul.f32 %v364, %v328
    %v371 = vmul.f32 %v368, %v330
    %374 = vrot.lane.b32.xlu0 %v370, 96
    %v375 = vpop.permute.xlu0 %374
    %376 = vrot.lane.b32.xlu0 %v371, 96
    %v377 = vpop.permute.xlu0 %376
    %v380 = vadd.f32 %v358, %v375
    %v381 = vadd.f32 %v359, %v377
    %v382 = vmul.f32 %v364, %v342
    %v383 = vmul.f32 %v368, %v344
    %386 = vrot.lane.b32.xlu0 %v382, 96
    %v387 = vpop.permute.xlu0 %386
    %388 = vrot.lane.b32.xlu0 %v383, 96
    %v389 = vpop.permute.xlu0 %388
    %v392 = vadd.f32 %v360, %v387
    %v393 = vadd.f32 %v361, %v389
    %394 = vset.pattern.permute.xlu0 2
    %395 = vperm.xlu0 %394, %v346
    %v396 = vpop.permute.xlu0 %395
    %398 = vset.pattern.permute.xlu0 2
    %399 = vperm.xlu0 %398, %v347
    %v400 = vpop.permute.xlu0 %399
    %v402 = vmul.f32 %v396, %v328
    %v403 = vmul.f32 %v400, %v330
    %406 = vrot.lane.b32.xlu0 %v402, 64
    %v407 = vpop.permute.xlu0 %406
    %408 = vrot.lane.b32.xlu0 %v403, 64
    %v409 = vpop.permute.xlu0 %408
    %v412 = vadd.f32 %v380, %v407
    %v413 = vadd.f32 %v381, %v409
    %v414 = vmul.f32 %v396, %v342
    %v415 = vmul.f32 %v400, %v344
    %418 = vrot.lane.b32.xlu0 %v414, 64
    %v419 = vpop.permute.xlu0 %418
    %420 = vrot.lane.b32.xlu0 %v415, 64
    %v421 = vpop.permute.xlu0 %420
    %v424 = vadd.f32 %v392, %v419
    %v425 = vadd.f32 %v393, %v421
    %426 = vset.pattern.permute.xlu0 3
    %427 = vperm.xlu0 %426, %v346
    %v428 = vpop.permute.xlu0 %427
    %430 = vset.pattern.permute.xlu0 3
    %431 = vperm.xlu0 %430, %v347
    %v432 = vpop.permute.xlu0 %431
    %v434 = vmul.f32 %v428, %v328
    %v435 = vmul.f32 %v432, %v330
    %438 = vrot.lane.b32.xlu0 %v434, 32
    %v439 = vpop.permute.xlu0 %438
    %440 = vrot.lane.b32.xlu0 %v435, 32
    %v441 = vpop.permute.xlu0 %440
    %v444 = vadd.f32 %v412, %v439
    %v445 = vadd.f32 %v413, %v441
    %v446 = vmul.f32 %v428, %v342
    %v447 = vmul.f32 %v432, %v344
    %450 = vrot.lane.b32.xlu0 %v446, 32
    %v451 = vpop.permute.xlu0 %450
    %452 = vrot.lane.b32.xlu0 %v447, 32
    %v453 = vpop.permute.xlu0 %452
    %v456 = vadd.f32 %v424, %v451
    %v457 = vadd.f32 %v425, %v453
    %v458 = vld [vmem:[%s12] sm:$0x3]
    %v461 = vunpack.c.l.b16 %v128
    %v462 = vunpack.c.l.b16 %v129
    %v463 = vpack.c.b16 %v462, %v461
    %vm464 = vcmask 31744
    %v466 = vsel %vm464, %v463, 0
    %vm468 = vcmask 1041408
    %v470 = vsel %vm468, %v458, 0
    %472 = vmatpush.bf16.msra.mxu0 0
    %473 = vmatpush.bf16.msra.mxu0 0
    %474 = vmatpush.bf16.msra.mxu0 0
    %475 = vmatpush.bf16.msra.mxu0 0
    %476 = vmatpush.bf16.msra.mxu0 0
    %477 = vmatpush.bf16.msra.mxu0 0
    %478 = vmatpush.bf16.msra.mxu0 0
    %479 = vmatpush.bf16.msra.mxu0 %v470
    %480 = vmatmul.bf16.gmra.mxu0 %v466
    %v481 = vpop.f32.mrf.mxu0
    %v482 = vadd.f32 0.0, %v481
    %v483 = vpop.f32.mrf.mxu0
    %v484 = vadd.f32 0.0, %v483
    %485 = vdwg.mxu0
    %v486 = vmul.f32 %v444, %v261
    %v487 = vmul.f32 %v445, %v263
    %v488 = vpack.c.bf16 %v487, %v486
    %v489 = vld [vmem:[%s13] sm:$0xf]
    %v490 = vld [vmem:[%s13 + $0x4] sm:$0xf]
    %v491 = vld [vmem:[%s13 + $0x8] sm:$0xf]
    %v492 = vld [vmem:[%s13 + $0xc] sm:$0xf]
    %v497 = vunpack.c.l.b16 %v489
    %v498 = vunpack.c.l.b16 %v490
    %v499 = vunpack.c.l.b16 %v491
    %v500 = vunpack.c.l.b16 %v492
    %v501 = vpack.c.b16 %v498, %v497
    %v502 = vpack.c.b16 %v500, %v499
    %vm505 = vcmask 261120
    %v507 = vsel %vm505, %v488, 0
    %509 = vmatpush.bf16.msra.mxu0 0
    %510 = vmatpush.bf16.msra.mxu0 0
    %511 = vmatpush.bf16.msra.mxu0 0
    %512 = vmatpush.bf16.msra.mxu0 0
    %513 = vmatpush.bf16.msra.mxu0 0
    %514 = vmatpush.bf16.msra.mxu0 0
    %515 = vmatpush.bf16.msra.mxu0 %v502
    %516 = vmatpush.bf16.msra.mxu0 %v501
    %517 = vmatmul.bf16.gmra.mxu0 %v507
    %v518 = vpop.f32.mrf.mxu0
    %v519 = vadd.f32 0.0, %v518
    %v520 = vpop.f32.mrf.mxu0
    %v521 = vadd.f32 0.0, %v520
    %522 = vdwg.mxu0
    %v523 = vmul.f32 %v519, %v482
    %v524 = vmul.f32 %v521, %v484
    %v525 = vmul.f32 %v523, 0.25
    %v526 = vmul.f32 %v524, 0.25
    %vm527 = vcmask 15360
    %v528 = vsel %vm527, %v525, -inf
    %v529 = vsel %vm527, %v526, -inf
    %v530 = vmax.f32 %v528, %v529
    %v531 = vrot.slane %v530, 4
    %v532 = vmax.f32 %v530, %v531
    %v533 = vrot.slane %v532, 2
    %v534 = vmax.f32 %v532, %v533
    %v535 = vrot.slane %v534, 1
    %v536 = vmax.f32 %v534, %v535
    %v537 = vsub.f32 %v525, %v536
    %v538 = vsub.f32 %v526, %v536
    %v539 = vmul.f32 %v537, 1.442695
    %v540 = vpow.pop %v539
    %v541 = vmul.f32 %v538, 1.442695
    %v542 = vpow.pop %v541
    %v543 = vpack.c.bf16 %v542, %v540
    %v545 = vsel %vm144, %v134, 0
    %547 = vmatpush.bf16.msra.mxu0 0
    %548 = vmatpush.bf16.msra.mxu0 0
    %549 = vmatpush.bf16.msra.mxu0 0
    %550 = vmatpush.bf16.msra.mxu0 0
    %551 = vmatpush.bf16.msra.mxu0 0
    %552 = vmatpush.bf16.msra.mxu0 0
    %553 = vmatpush.bf16.msra.mxu0 0
    %554 = vmatpush.bf16.msra.mxu0 %v543
    %555 = vmatmul.bf16.gmra.mxu0 %v545
    %v556 = vpop.f32.mrf.mxu0
    %v557 = vadd.f32 0.0, %v556
    %v558 = vpop.f32.mrf.mxu0
    %559 = vdwg.mxu0
    %vm560 = vcmp.le.f32.partialorder %v557, 0.0
    %v561 = vsel %vm560, 1.0, %v557
    %v562 = vrcp.pop %v561
    %v564 = vsel %vm527, %v543, 0
    %vm566 = vcmask 1040384
    %v568 = vsel %vm566, %v135, 0
    %570 = vmatpush.bf16.msra.mxu0 0
    %571 = vmatpush.bf16.msra.mxu0 0
    %572 = vmatpush.bf16.msra.mxu0 0
    %573 = vmatpush.bf16.msra.mxu0 0
    %574 = vmatpush.bf16.msra.mxu0 0
    %575 = vmatpush.bf16.msra.mxu0 0
    %576 = vmatpush.bf16.msra.mxu0 0
    %577 = vmatpush.bf16.msra.mxu0 %v568
    %578 = vmatmul.bf16.gmra.mxu0 %v564
    %v579 = vpop.f32.mrf.mxu0
    %v580 = vadd.f32 0.0, %v579
    %v581 = vpop.f32.mrf.mxu0
    %v582 = vadd.f32 0.0, %v581
    %583 = vdwg.mxu0
    %v584 = vmul.f32 %v456, %v580
    %v585 = vmul.f32 %v457, %v582
    %v586 = vpack.c.bf16 %v585, %v584
    %587 = vmatpush.bf16.msra.mxu0 0
    %588 = vmatpush.bf16.msra.mxu0 0
    %589 = vmatpush.bf16.msra.mxu0 0
    %590 = vmatpush.bf16.msra.mxu0 0
    %591 = vmatpush.bf16.msra.mxu0 0
    %592 = vmatpush.bf16.msra.mxu0 0
    %593 = vmatpush.bf16.msra.mxu0 0
    %594 = vmatpush.bf16.msra.mxu0 %v586
    %595 = vmatmul.bf16.gmra.mxu0 %v545
    %v596 = vpop.f32.mrf.mxu0
    %v597 = vadd.f32 0.0, %v596
    %v598 = vpop.f32.mrf.mxu0
    %599 = vdwg.mxu0
    %v600 = vpack.c.bf16 %v562, %v562
    %v602 = vsel %vm527, %v600, 0
    %604 = vmatpush.bf16.msra.mxu0 0
    %605 = vmatpush.bf16.msra.mxu0 0
    %606 = vmatpush.bf16.msra.mxu0 0
    %607 = vmatpush.bf16.msra.mxu0 0
    %608 = vmatpush.bf16.msra.mxu0 0
    %609 = vmatpush.bf16.msra.mxu0 0
    %610 = vmatpush.bf16.msra.mxu0 0
    %611 = vmatpush.bf16.msra.mxu0 %v568
    %612 = vmatmul.bf16.gmra.mxu0 %v602
    %v613 = vpop.f32.mrf.mxu0
    %v614 = vadd.f32 0.0, %v613
    %v615 = vpop.f32.mrf.mxu0
    %616 = vdwg.mxu0
    %v617 = vmul.f32 %v597, %v614
    %v618 = vpack.c.bf16 %v617, %v617
    %v619 = vld [vmem:[%s9] sm:$0xf]
    %v620 = vld [vmem:[%s9 + $0x4] sm:$0xf]
    %v621 = vld [vmem:[%s9 + $0x8] sm:$0xf]
    %v622 = vld [vmem:[%s9 + $0xc] sm:$0xf]
    %v627 = vunpack.c.l.b16 %v619
    %v628 = vunpack.c.l.b16 %v620
    %v629 = vunpack.c.l.b16 %v621
    %v630 = vunpack.c.l.b16 %v622
    %v631 = vpack.c.b16 %v628, %v627
    %v632 = vpack.c.b16 %v630, %v629
    %v636 = vsel %vm505, %v618, 0
    %638 = vmatpush.bf16.msra.mxu0 0
    %639 = vmatpush.bf16.msra.mxu0 0
    %640 = vmatpush.bf16.msra.mxu0 0
    %641 = vmatpush.bf16.msra.mxu0 0
    %642 = vmatpush.bf16.msra.mxu0 0
    %643 = vmatpush.bf16.msra.mxu0 0
    %644 = vmatpush.bf16.msra.mxu0 %v632
    %645 = vmatpush.bf16.msra.mxu0 %v631
    %646 = vmatmul.bf16.gmra.mxu0 %v636
    %v647 = vpop.f32.mrf.mxu0
    %v648 = vadd.f32 0.0, %v647
    %v649 = vpop.f32.mrf.mxu0
    %650 = vdwg.mxu0
    %v651 = vpack.c.bf16 %v648, %v648
    %v652 = vunpack.c.l.bf16 %v127
    %v653 = vunpack.c.l.bf16 %v651
    %v654 = vmul.f32 %v652, %v653
    %v655 = vpack.c.bf16 %v654, %v654
    %v656 = vld [vmem:[%s15] sm:$0xf]
    %v657 = vld [vmem:[%s15 + $0x4] sm:$0xf]
    %v658 = vld [vmem:[%s15 + $0x8] sm:$0xf]
    %v659 = vld [vmem:[%s15 + $0xc] sm:$0xf]
    %v660 = vld [vmem:[%s15 + $0x10] sm:$0xf]
    %v661 = vld [vmem:[%s15 + $0x14] sm:$0xf]
    %v662 = vld [vmem:[%s15 + $0x18] sm:$0xf]
    %v663 = vld [vmem:[%s15 + $0x1c] sm:$0xf]
    %v664 = vld [vmem:[%s15 + $0x20] sm:$0xf]
    %v665 = vld [vmem:[%s15 + $0x24] sm:$0xf]
    %v666 = vld [vmem:[%s15 + $0x28] sm:$0xf]
    %v667 = vld [vmem:[%s15 + $0x2c] sm:$0xf]
    %v680 = vunpack.c.l.b16 %v656
    %v681 = vunpack.c.l.b16 %v657
    %v682 = vunpack.c.l.b16 %v658
    %v683 = vunpack.c.l.b16 %v659
    %v684 = vunpack.c.l.b16 %v660
    %v685 = vunpack.c.l.b16 %v661
    %v686 = vunpack.c.l.b16 %v662
    %v687 = vunpack.c.l.b16 %v663
    %v688 = vunpack.c.l.b16 %v664
    %v689 = vunpack.c.l.b16 %v665
    %v690 = vunpack.c.l.b16 %v666
    %v691 = vunpack.c.l.b16 %v667
    %v692 = vpack.c.b16 %v681, %v680
    %v693 = vpack.c.b16 %v683, %v682
    %v694 = vpack.c.b16 %v685, %v684
    %v695 = vpack.c.b16 %v687, %v686
    %v696 = vpack.c.b16 %v689, %v688
    %v697 = vpack.c.b16 %v691, %v690
    %vm704 = vcmask 785408
    %v706 = vsel %vm704, %v655, 0
    %708 = vmatpush.bf16.msra.mxu0 0
    %709 = vmatpush.bf16.msra.mxu0 0
    %710 = vmatpush.bf16.msra.mxu0 %v697
    %711 = vmatpush.bf16.msra.mxu0 %v696
    %712 = vmatpush.bf16.msra.mxu0 %v695
    %713 = vmatpush.bf16.msra.mxu0 %v694
    %714 = vmatpush.bf16.msra.mxu0 %v693
    %715 = vmatpush.bf16.msra.mxu0 %v692
    %716 = vmatmul.bf16.gmra.mxu0 %v706
    %v717 = vpop.f32.mrf.mxu0
    %v718 = vadd.f32 0.0, %v717
    %v719 = vpop.f32.mrf.mxu0
    %720 = vdwg.mxu0
    %v721 = vsub.f32 0.0, %v718
    %v722 = vmul.f32 %v721, 1.442695
    %v723 = vpow.pop %v722
    %v724 = vadd.f32 %v723, 1.0
    %v725 = vrcp.pop %v724
    %v726 = vmul.f32 %v718, %v725
    %v727 = vld [vmem:[%s16] sm:$0x1]
    %v728 = vunpack.c.l.bf16 %v125
    %v730 = vperm.slane %v727, 0
    %v732 = vmul.f32 %v728, %v730
    %vm733 = vcmask 23552
    %v734 = vsel %vm733, %v732, 0.0
    %735 = vadd.xlane.f32.xlu0 %v734
    %v736 = vpop.xlane.xlu0 %735
    %v737 = vsub.f32 0.0, %v736
    %v738 = vmul.f32 %v737, 1.442695
    %v739 = vpow.pop %v738
    %v740 = vadd.f32 %v739, 1.0
    %v741 = vrcp.pop %v740
    %v742 = vld [vmem:[%s17] sm:$0xf]
    %v743 = vld [vmem:[%s17 + $0x4] sm:$0xf]
    %v746 = vunpack.c.l.b16 %v742
    %v747 = vunpack.c.l.b16 %v743
    %v748 = vpack.c.b16 %v747, %v746
    %750 = vmatpush.bf16.msra.mxu0 0
    %751 = vmatpush.bf16.msra.mxu0 0
    %752 = vmatpush.bf16.msra.mxu0 0
    %753 = vmatpush.bf16.msra.mxu0 0
    %754 = vmatpush.bf16.msra.mxu0 0
    %755 = vmatpush.bf16.msra.mxu0 0
    %756 = vmatpush.bf16.msra.mxu0 0
    %757 = vmatpush.bf16.msra.mxu0 %v748
    %758 = vmatmul.bf16.gmra.mxu0 %v146
    %v759 = vpop.f32.mrf.mxu0
    %v760 = vadd.f32 0.0, %v759
    %v761 = vpop.f32.mrf.mxu0
    %762 = vdwg.mxu0
    %v763 = vmul.f32 %v726, %v741
    %v764 = vsub.f32 1.0, %v741
    %v765 = vmul.f32 %v760, %v764
    %v766 = vadd.f32 %v763, %v765
    %v767 = vsel %vm505, %v766, 0.0
    %768 = vadd.xlane.f32.xlu0 %v767
    %v769 = vpop.xlane.xlu0 %768
    %v770 = vrcp.pop 32.0
    %v771 = vmul.f32 32.0, %v770
    %v772 = vsub.f32 1.0, %v771
    %v773 = vmul.f32 %v770, %v772
    %v774 = vadd.f32 %v770, %v773
    %vm775 = vweird.f32 %v770
    %v776 = vsel %vm775, %v770, %v774
    %v777 = vmul.f32 %v769, %v776
    %v778 = vsub.f32 %v766, %v777
    %v779 = vmul.f32 %v778, %v778
    %v780 = vsel %vm505, %v779, 0.0
    %781 = vadd.xlane.f32.xlu0 %v780
    %v782 = vpop.xlane.xlu0 %781
    %v783 = vmul.f32 %v782, %v776
    %v784 = vadd.f32 %v783, 1e-05
    %v785 = vrsqrt.pop %v784
    %v786 = vmul.f32 %v785, %v784
    %v787 = vmul.f32 %v786, %v785
    %v788 = vmul.f32 0.5, %v787
    %v789 = vsub.f32 1.5, %v788
    %v790 = vmul.f32 %v785, %v789
    %vm791 = vweird.f32 %v784
    %vm792 = vweird.f32 %v785
    %vm793 = vmor %vm791, %vm792
    %v794 = vsel %vm793, %v785, %v790
    %v795 = vmul.f32 %v778, %v794
    %v796 = vld [vmem:[%s18] sm:$0x1]
    %v798 = vperm.slane %v796, 0
    %v800 = vmul.f32 %v795, %v798
    %v801 = vld [vmem:[%s19] sm:$0x1]
    %v803 = vperm.slane %v801, 0
    %v805 = vadd.f32 %v800, %v803
    %806 = vst.msk [vmem:[#allocation10] sm:$0xff] %vm505, %v805
    // Predicated region
    $region98: #{tpu_custom_call.1} parent=1 // pred_check
      _
    $region99: #{tpu_custom_call.1} parent=1 // pred_check_branch
      %808 = sbr.rel (0) target = $region101
    $region100: #{tpu_custom_call.1} parent=1 // pred_region
      %810 = vsyncadd [#allocation4], 0
      %s812 = sshll.u32 [#allocation10], 4
      %s813 = int_to_ptr.vmem [resolvable:$true] %s812
      %s814 = sshll.u32 %s20, 4
      %s815 = int_to_ptr.hbm [resolvable:$true] %s814
      %817 = dma.vmem_to_hbm [thread:$0]  %s813, 128, %s815, [#allocation4]
    $region101: #{tpu_custom_call.1} parent=1 // pred_fallthru
      _
    // Predicated region
    $region102: #{tpu_custom_call.1} parent=1 // pred_check
      _
    $region103: #{tpu_custom_call.1} parent=1 // pred_check_branch
      %819 = sbr.rel (0) target = $region105
    $region104: #{tpu_custom_call.1} parent=1 // pred_region
      %821 = dma.done [#allocation4], 128
    $region105: #{tpu_custom_call.1} parent=1 // pred_fallthru
      _
    %822 = vsyncpa [#allocation3], 1
    %823 = vsyncpa [#allocation6], 1
    %824 = vsyncpa [#allocation9], 1
    %825 = vsyncpa [#allocation4], 1

</llo_original>
